<compile_context>
chip_gen: v7x
topology: tpu7x:2x2x1
jax: 0.10.0
libtpu: 0.0.40
codegen_flags: <defaults>
</compile_context>

<pallas_src>
import jax
import jax.numpy as jnp
from jax.experimental import pallas as pl
from jax.experimental.pallas import tpu as pltpu

INIT = 0.01


# ----------------------------------------------------------------------------
# Kernel bodies
# ----------------------------------------------------------------------------
def _fused_kernel_single_k(x_ref, w_ref, b_ref, r_ref, o_ref):
    """Whole contraction in one tile: no accumulator, no pl.when phases."""
    z = jnp.dot(x_ref[...], w_ref[...], preferred_element_type=jnp.float32)
    z = z + b_ref[...].astype(jnp.float32)                      # bias row (ones column)
    o_ref[...] = (jnp.tanh(z) + r_ref[...].astype(jnp.float32)).astype(o_ref.dtype)


def _fused_kernel_tiled_k(x_ref, w_ref, b_ref, r_ref, o_ref, acc_ref):
    """K-tiled reduction path (grid axis 2 = reduction)."""
    @pl.when(pl.program_id(2) == 0)
    def _():
        acc_ref[...] = jnp.zeros_like(acc_ref)

    acc_ref[...] += jnp.dot(x_ref[...], w_ref[...],
                            preferred_element_type=jnp.float32)

    @pl.when(pl.program_id(2) == pl.num_programs(2) - 1)
    def _():
        z = acc_ref[...] + b_ref[...].astype(jnp.float32)
        o_ref[...] = (jnp.tanh(z) + r_ref[...].astype(jnp.float32)).astype(o_ref.dtype)


# ----------------------------------------------------------------------------
# Tile selection helpers
# ----------------------------------------------------------------------------
def _round_up(x: int, m: int) -> int:
    return (x + m - 1) // m * m


def _vmem_capacity_bytes() -> int:
    try:
        return int(pltpu.get_tpu_info().vmem_capacity_bytes)
    except Exception:
        return 64 << 20          # v7x per-core VMEM: safe lower bound everywhere


def _pick_tiles(M: int, K: int, N: int, itemsize: int, vmem_cap: int):
    """Returns (tm, tn, tk, M_pad, N_pad, K_pad, tiled_k)."""
    budget = max(8 << 20, int(vmem_cap * 0.40))   # bytes for double-buffered block set

    # --- N (lane) tile: full-extent block if small; 128-multiple tiles otherwise.
    if N <= 512:
        tn, N_pad = N, N
    else:
        N_pad = _round_up(N, 128)
        tn = next(t for t in (512, 256, 128) if N_pad % t == 0)

    # --- K (contraction): keep whole-K blocks unless K is very large.
    k_single_max = 4096 if itemsize <= 2 else 2048
    tiled_k = K > k_single_max
    if tiled_k:
        tk = 512
        K_pad = _round_up(K, tk)
    else:
        tk, K_pad = K, K

    # --- M (sublane) tile cap from dtype and the VMEM block budget.
    cap = 1024 if itemsize <= 2 else 512
    per_tm = (2 * tk + 4 * tn) * itemsize + (4 * tn if tiled_k else 0)
    fixed = 2 * (tk * tn + tn) * itemsize
    cap = min(cap, max(8, ((budget - fixed) // per_tm) // 8 * 8))

    if M <= cap:
        tm, M_pad = M, M                          # full-extent block, no pad
    elif M % 8 == 0:
        tm = 8                                    # largest divisor of M, mult of 8, <= cap
        for t in range(cap - cap % 8, 7, -8):
            if M % t == 0:
                tm = t
                break
        M_pad = M
        if tm < 64 and M > 4096:                  # avoid thousands of tiny steps
            tm = cap
            M_pad = _round_up(M, tm)
    else:
        tm = cap
        M_pad = _round_up(M, tm)

    # --- Megacore: give mid/large single-tile shapes >= 2 grid points.
    if M_pad == tm and N_pad == tn and not tiled_k and M >= 256 and M % 16 == 0:
        tm = M // 2

    return tm, tn, tk, M_pad, N_pad, K_pad, tiled_k


# ----------------------------------------------------------------------------
# Wrapper
# ----------------------------------------------------------------------------
def linear_pairwise(data: jax.Array, w: jax.Array, residual: jax.Array,
                    *, compute_dtype=None) -> jax.Array:
    """Pallas implementation of LinearPairwise.forward.

    data:     (B, P, in_dim)
    w:        (in_dim + 1, out_dim)   -- last row is the bias (ones column)
    residual: (B, P, out_dim)
    compute_dtype: optional I/O dtype override (e.g. jnp.bfloat16 to halve HBM
                   bytes and get full MXU rate on v6e/v7x).  Accumulation and
                   the tanh/bias/residual epilogue are always f32.
    returns   tanh(concat([data, 1], -1) @ w) + residual
    """
    B, P, K = data.shape
    Kw, N = w.shape
    assert Kw == K + 1, f"weight rows {Kw} != in_dim+1 {K + 1}"
    assert residual.shape == (B, P, N)

    if compute_dtype is not None:
        io_dtype = jnp.dtype(compute_dtype)
    else:
        io_dtype = jnp.promote_types(jnp.promote_types(data.dtype, w.dtype),
                                     residual.dtype)
    out_dtype = io_dtype

    M = B * P
    x2 = data.reshape(M, K).astype(io_dtype)
    r2 = residual.reshape(M, N).astype(io_dtype)
    w_main = w[:K, :].astype(io_dtype)        # (K, N)
    bias = w[K:K + 1, :].astype(io_dtype)     # (1, N) -- the ones-column row

    vmem_cap = _vmem_capacity_bytes()
    itemsize = jnp.dtype(io_dtype).itemsize
    tm, tn, tk, M_pad, N_pad, K_pad, tiled_k = _pick_tiles(M, K, N, itemsize, vmem_cap)

    # Pad only when strictly required (padding x/r costs extra HBM round trips).
    if M_pad != M or K_pad != K:
        x2 = jnp.pad(x2, ((0, M_pad - M), (0, K_pad - K)))
    if K_pad != K or N_pad != N:
        w_main = jnp.pad(w_main, ((0, K_pad - K), (0, N_pad - N)))
    if N_pad != N:
        bias = jnp.pad(bias, ((0, 0), (0, N_pad - N)))
    if M_pad != M or N_pad != N:
        r2 = jnp.pad(r2, ((0, M_pad - M), (0, N_pad - N)))

    grid_m = M_pad // tm
    grid_n = N_pad // tn
    grid_k = K_pad // tk

    out_shape = jax.ShapeDtypeStruct((M_pad, N_pad), out_dtype)

    # Explicit scoped-VMEM limit (v5e's default is only ~16 MiB).
    needed = (2 * (tm * tk + tk * tn + tn + tm * tn) + 2 * tm * tn) * itemsize
    if tiled_k:
        needed += tm * tn * 4
    vmem_limit = int(min(int(vmem_cap * 0.75), max(32 << 20, needed + (8 << 20))))

    if not tiled_k:
        # Loop order that minimizes re-streamed HBM traffic:
        #   N-fastest: X streamed once, W re-read grid_m times.
        #   M-fastest: W streamed once, X re-read grid_n times.
        n_fastest = (M * K + grid_m * K * N) <= (K * N + grid_n * M * K)
        if n_fastest:
            grid = (grid_m, grid_n)
            x_map = lambda i, j: (i, 0)
            w_map = lambda i, j: (0, j)
            b_map = lambda i, j: (0, j)
            o_map = lambda i, j: (i, j)
        else:
            grid = (grid_n, grid_m)
            x_map = lambda j, i: (i, 0)
            w_map = lambda j, i: (0, j)
            b_map = lambda j, i: (0, j)
            o_map = lambda j, i: (i, j)

        out2 = pl.pallas_call(
            _fused_kernel_single_k,
            out_shape=out_shape,
            grid_spec=pltpu.PrefetchScalarGridSpec(
                num_scalar_prefetch=0,
                grid=grid,
                in_specs=[
                    pl.BlockSpec((tm, K_pad), x_map),   # x
                    pl.BlockSpec((K_pad, tn), w_map),   # w (ones column folded out)
                    pl.BlockSpec((1, tn), b_map),       # bias row
                    pl.BlockSpec((tm, tn), o_map),      # residual
                ],
                out_specs=pl.BlockSpec((tm, tn), o_map),
            ),
            input_output_aliases={3: 0},                # residual buffer reused as output
            compiler_params=pltpu.CompilerParams(
                dimension_semantics=("parallel", "parallel"),
                vmem_limit_bytes=vmem_limit),
        )(x2, w_main, bias, r2)
    else:
        out2 = pl.pallas_call(
            _fused_kernel_tiled_k,
            out_shape=out_shape,
            grid_spec=pltpu.PrefetchScalarGridSpec(
                num_scalar_prefetch=0,
                grid=(grid_m, grid_n, grid_k),
                in_specs=[
                    pl.BlockSpec((tm, tk), lambda i, j, k: (i, k)),   # x
                    pl.BlockSpec((tk, tn), lambda i, j, k: (k, j)),   # w
                    pl.BlockSpec((1, tn), lambda i, j, k: (0, j)),    # bias row
                    pl.BlockSpec((tm, tn), lambda i, j, k: (i, j)),   # residual
                ],
                out_specs=pl.BlockSpec((tm, tn), lambda i, j, k: (i, j)),
                scratch_shapes=[pltpu.VMEM((tm, tn), jnp.float32)],
            ),
            input_output_aliases={3: 0},
            compiler_params=pltpu.CompilerParams(
                dimension_semantics=("parallel", "parallel", "arbitrary"),
                vmem_limit_bytes=vmem_limit),
        )(x2, w_main, bias, r2)

    if M_pad != M or N_pad != N:
        out2 = out2[:M, :N]
    return out2.reshape(B, P, N)


# ----------------------------------------------------------------------------
# Demo / correctness check
# ----------------------------------------------------------------------------
if __name__ == "__main__":
    # Module config: in_dim=32, out_dim=64; data is (batch, n_pairwise, in_dim).
    in_dim, out_dim = 32, 64
    batch, n_pair = 2, 8
    dtype = jnp.float32

    key = jax.random.PRNGKey(0)
    k_w, k_x, k_r = jax.random.split(key, 3)

    # Mirrors tc.normal(0.0, INIT, (in_dim + 1, out_dim)).
    w = (INIT * jax.random.normal(k_w, (in_dim + 1, out_dim))).astype(dtype)
    data = jax.random.normal(k_x, (batch, n_pair, in_dim)).astype(dtype)
    residual = jax.random.normal(k_r, (batch, n_pair, out_dim)).astype(dtype)

    # Plain-JAX reference of the exact PyTorch forward.
    ones = jnp.ones((batch, n_pair, 1), dtype=dtype)
    ref = jnp.tanh(jnp.concatenate((data, ones), axis=-1) @ w) + residual

    # Native-dtype (f32) path: no padding, single grid step, full-extent blocks.
    out = jax.block_until_ready(linear_pairwise(data, w, residual))
    assert out.shape == (batch, n_pair, out_dim)
    assert jnp.allclose(out, ref, atol=1e-5, rtol=1e-5), "f32 mismatch vs reference"

    # bf16 I/O path (halved HBM bytes, full MXU rate on v6e/v7x; f32 epilogue).
    out_bf16 = jax.block_until_ready(
        linear_pairwise(data, w, residual, compute_dtype=jnp.bfloat16))
    assert out_bf16.dtype == jnp.bfloat16
    assert jnp.allclose(out_bf16.astype(jnp.float32), ref, atol=3e-2, rtol=3e-2), \
        "bf16 mismatch vs reference"

    print("KERNEL_OK")
</pallas_src>

<mosaic_0001>
module attributes {stable_mosaic.version = 11 : i64} {
  func.func @_fused_kernel_single_k(%arg0: i32, %arg1: i32, %arg2: memref<16x32xf32, #tpu.memory_space<vmem>>, %arg3: memref<32x64xf32, #tpu.memory_space<vmem>>, %arg4: memref<1x64xf32, #tpu.memory_space<vmem>>, %arg5: memref<16x64xf32, #tpu.memory_space<vmem>>, %arg6: memref<16x64xf32, #tpu.memory_space<vmem>>) attributes {dimension_semantics = [#tpu.dimension_semantics<parallel>, #tpu.dimension_semantics<parallel>], iteration_bounds = array<i64: 1, 1>, scalar_prefetch = 0 : i64, scratch_operands = 0 : i64, tpu.core_type = #tpu.core_type<tc>, window_params = [{transform_indices = @transform_0, window_bounds = array<i64: 16, 32>}, {transform_indices = @transform_1, window_bounds = array<i64: 32, 64>}, {transform_indices = @transform_2, window_bounds = array<i64: 1, 64>}, {transform_indices = @transform_3, window_bounds = array<i64: 16, 64>}, {transform_indices = @transform_4, window_bounds = array<i64: 16, 64>}]} {
    %c0 = arith.constant 0 : index
    %c0_0 = arith.constant 0 : index
    %0 = vector.load %arg2[%c0, %c0_0] : memref<16x32xf32, #tpu.memory_space<vmem>>, vector<16x32xf32>
    %c0_1 = arith.constant 0 : index
    %c0_2 = arith.constant 0 : index
    %1 = vector.load %arg3[%c0_1, %c0_2] : memref<32x64xf32, #tpu.memory_space<vmem>>, vector<32x64xf32>
    %cst = arith.constant dense<0.000000e+00> : vector<16x64xf32>
    %2 = tpu.matmul %0, %1, %cst {dimension_numbers = #tpu.dot_dimension_numbers<[1], [0], [0], [1], [0, 0, 1, 1], [], []>} : vector<16x32xf32>, vector<32x64xf32>, vector<16x64xf32> -> vector<16x64xf32>
    %c0_3 = arith.constant 0 : index
    %c0_4 = arith.constant 0 : index
    %3 = vector.load %arg4[%c0_3, %c0_4] : memref<1x64xf32, #tpu.memory_space<vmem>>, vector<1x64xf32>
    %4 = vector.broadcast %3 : vector<1x64xf32> to vector<16x64xf32>
    %5 = arith.addf %2, %4 : vector<16x64xf32>
    %6 = math.tanh %5 : vector<16x64xf32>
    %c0_5 = arith.constant 0 : index
    %c0_6 = arith.constant 0 : index
    %7 = vector.load %arg5[%c0_5, %c0_6] : memref<16x64xf32, #tpu.memory_space<vmem>>, vector<16x64xf32>
    %8 = arith.addf %6, %7 : vector<16x64xf32>
    %c0_7 = arith.constant 0 : index
    %c0_8 = arith.constant 0 : index
    %9 = vector.load %arg6[%c0_7, %c0_8] : memref<16x64xf32, #tpu.memory_space<vmem>>, vector<16x64xf32>
    tpu.vector_store %arg6[%c0_7, %c0_8], %8 {strides = array<i32>} : memref<16x64xf32, #tpu.memory_space<vmem>>, vector<16x64xf32>,
    return
  }
  func.func @transform_0(%arg0: i32, %arg1: i32) -> (i32, i32) {
    %c0_i32 = arith.constant 0 : i32
    %c0_i32_0 = arith.constant 0 : i32
    return %arg0, %c0_i32 : i32, i32
  }
  func.func @transform_1(%arg0: i32, %arg1: i32) -> (i32, i32) {
    %c0_i32 = arith.constant 0 : i32
    %c0_i32_0 = arith.constant 0 : i32
    return %c0_i32, %arg1 : i32, i32
  }
  func.func @transform_2(%arg0: i32, %arg1: i32) -> (i32, i32) {
    %c0_i32 = arith.constant 0 : i32
    %c0_i32_0 = arith.constant 0 : i32
    return %c0_i32, %arg1 : i32, i32
  }
  func.func @transform_3(%arg0: i32, %arg1: i32) -> (i32, i32) {
    %c0_i32 = arith.constant 0 : i32
    return %arg0, %arg1 : i32, i32
  }
  func.func @transform_4(%arg0: i32, %arg1: i32) -> (i32, i32) {
    %c0_i32 = arith.constant 0 : i32
    return %arg0, %arg1 : i32, i32
  }
}

</mosaic_0001>

<llo_original>
// kernel: tpu_custom_call.1
$region0: #{tpu_custom_call.1}
  #allocation0 [shape = 'u32[]', space=smem, size = 0x4, offset = 0x4, fixed_abs, tag = 'smem constant byte address 0x4 - core index']
  #allocation1 [shape = 'u32[144,128]{1,0:T(1,128)}', space=vmem, size = 0x12000, scoped, tag = 'internal scratch']
  %s0 = inlined_call_operand.hbm [shape: f32[16,32], index: 0, kind: input, shape index: {}]
  %s1 = inlined_call_operand.vmem [shape: f32[32,64], index: 1, kind: input, shape index: {}]
  %s2 = inlined_call_operand.vmem [shape: f32[1,64], index: 2, kind: input, shape index: {}]
  %s3 = inlined_call_operand.hbm [shape: f32[16,64], index: 3, kind: input, shape index: {}, may-alias: {3,4}]
  %s4 = inlined_call_operand.hbm [shape: f32[16,64], index: 4, kind: output, shape index: {}, may-alias: {3,4}]
  %s5 = sld [smem:[#allocation0]]
  $region34: #{tpu_custom_call.1} parent=0
    _
  %s7 = ssub.s32 1, %s5
  %s8 = scalar_select 0, %s7, %s5
  $region1: #{tpu_custom_call.1} parent=0
    #allocation2 [shape = 'u8[8192]{0}', space=vmem, size = 0x2000, scoped, tag = 'input window, operand 0, single buffered']
    #allocation3 [shape = 's32[1]{0}', space=sflag, size = 0x4, scoped, tag = 'scoped memory for tpu_custom_call.1']
    #allocation4 [shape = 's32[1]{0}', space=sflag, size = 0x4, scoped, tag = 'scoped memory for tpu_custom_call.1']
    #allocation5 [shape = 'u8[8192]{0}', space=vmem, size = 0x2000, scoped, tag = 'input window, operand 3, single buffered']
    #allocation6 [shape = 's32[1]{0}', space=sflag, size = 0x4, scoped, tag = 'scoped memory for tpu_custom_call.1']
    #allocation7 [shape = 'u8[8192]{0}', space=vmem, size = 0x2000, scoped, tag = 'output window, operand 0, single buffered']
    %9 = vsyncpa [#allocation3], 0
    %10 = vsyncpa [#allocation6], 0
    %11 = vsyncpa [#allocation4], 0
    // Predicated region
    $region2: #{tpu_custom_call.1} parent=1 // pred_check
      _
    $region3: #{tpu_custom_call.1} parent=1 // pred_check_branch
      %13 = sbr.rel (0) target = $region5
    $region4: #{tpu_custom_call.1} parent=1 // pred_region
      %s15 = ssub.s32 256, 256
      %16 = vsyncadd [#allocation3], %s15
      %s17 = sshll.u32 [#allocation2], 4
      %s18 = int_to_ptr.vmem [resolvable:$true] %s17
      %23 = dma.hbm_to_vmem [thread:$0]  %s0, 256, %s18, [#allocation3], 128, 128, 8
    $region5: #{tpu_custom_call.1} parent=1 // pred_fallthru
      _
    // Predicated region
    $region6: #{tpu_custom_call.1} parent=1 // pred_check
      _
    $region7: #{tpu_custom_call.1} parent=1 // pred_check_branch
      %25 = sbr.rel (0) target = $region9
    $region8: #{tpu_custom_call.1} parent=1 // pred_region
      _
    $region9: #{tpu_custom_call.1} parent=1 // pred_fallthru
      _
    // Predicated region
    $region10: #{tpu_custom_call.1} parent=1 // pred_check
      _
    $region11: #{tpu_custom_call.1} parent=1 // pred_check_branch
      %27 = sbr.rel (0) target = $region13
    $region12: #{tpu_custom_call.1} parent=1 // pred_region
      _
    $region13: #{tpu_custom_call.1} parent=1 // pred_fallthru
      _
    // Predicated region
    $region14: #{tpu_custom_call.1} parent=1 // pred_check
      _
    $region15: #{tpu_custom_call.1} parent=1 // pred_check_branch
      %29 = sbr.rel (0) target = $region17
    $region16: #{tpu_custom_call.1} parent=1 // pred_region
      %s31 = ssub.s32 256, 256
      %32 = vsyncadd [#allocation6], %s31
      %s33 = sshll.u32 [#allocation5], 4
      %s34 = int_to_ptr.vmem [resolvable:$true] %s33
      %39 = dma.hbm_to_vmem [thread:$0]  %s3, 256, %s34, [#allocation6], 128, 128, 8
    $region17: #{tpu_custom_call.1} parent=1 // pred_fallthru
      _
    // Predicated region
    $region18: #{tpu_custom_call.1} parent=1 // pred_check
      _
    $region19: #{tpu_custom_call.1} parent=1 // pred_check_branch
      %41 = sbr.rel (0) target = $region21
    $region20: #{tpu_custom_call.1} parent=1 // pred_region
      %42 = dma.done [#allocation3], 256
    $region21: #{tpu_custom_call.1} parent=1 // pred_fallthru
      _
    // Predicated region
    $region22: #{tpu_custom_call.1} parent=1 // pred_check
      _
    $region23: #{tpu_custom_call.1} parent=1 // pred_check_branch
      %44 = sbr.rel (0) target = $region25
    $region24: #{tpu_custom_call.1} parent=1 // pred_region
      %45 = dma.done [#allocation6], 256
    $region25: #{tpu_custom_call.1} parent=1 // pred_fallthru
      _
    %v46 = vld [vmem:[#allocation2] sm:$0xff]
    %v47 = vld [vmem:[#allocation2 + $0x8] sm:$0xff]
    %v48 = vld [vmem:[%s1] sm:$0xff]
    %v49 = vld [vmem:[%s1 + $0x8] sm:$0xff]
    %v50 = vld [vmem:[%s1 + $0x10] sm:$0xff]
    %v51 = vld [vmem:[%s1 + $0x18] sm:$0xff]
    %v52 = vld [vmem:[%s2] sm:$0x1]
    %v54 = vlaneseq
    %v55 = vshrl.u32 %v54, 7
    %v56 = vsub.s32 0, %v55
    %v57 = vrot.slane %v52, %v56
    %vm59 = vcmask 261120
    %v61 = vsel %vm59, %v46, 0
    %v64 = vsel %vm59, %v47, 0
    %66 = vmatprep.subr.mxu0 0.0
    %67 = vmatpush1.msra.mxu0 %v48
    %68 = vmatprep.subr.mxu0 0.0
    %69 = vmatpush1.msra.mxu0 %v49
    %70 = vmatprep.subr.mxu0 0.0
    %71 = vmatpush1.msra.mxu0 %v50
    %72 = vmatprep.subr.mxu0 0.0
    %73 = vmatpush1.msra.mxu0 %v51
    %74 = vmatprep.subr.mxu0 0.0
    %75 = vmatpush1.msra.mxu0 0.0
    %76 = vmatprep.subr.mxu0 0.0
    %77 = vmatpush1.msra.mxu0 0.0
    %78 = vmatprep.subr.mxu0 0.0
    %79 = vmatpush1.msra.mxu0 0.0
    %80 = vmatprep.subr.mxu0 0.0
    %81 = vmatpush1.msra.mxu0 0.0
    %82 = vmatprep.subr.mxu0 0.0
    %83 = vmatpush1.msra.mxu0 0.0
    %84 = vmatprep.subr.mxu0 0.0
    %85 = vmatpush1.msra.mxu0 0.0
    %86 = vmatprep.subr.mxu0 0.0
    %87 = vmatpush1.msra.mxu0 0.0
    %88 = vmatprep.subr.mxu0 0.0
    %89 = vmatpush1.msra.mxu0 0.0
    %90 = vmatprep.subr.mxu0 0.0
    %91 = vmatpush1.msra.mxu0 0.0
    %92 = vmatprep.subr.mxu0 0.0
    %93 = vmatpush1.msra.mxu0 0.0
    %94 = vmatprep.subr.mxu0 0.0
    %95 = vmatpush1.msra.mxu0 0.0
    %96 = vmatprep.subr.mxu0 0.0
    %97 = vmatpush1.msra.mxu0 0.0
    %98 = vmatprep.subr.mxu0 0.0
    %99 = vmatpush1.msra.mxu0 0.0
    %100 = vmatprep.subr.mxu0 0.0
    %101 = vmatpush1.msra.mxu0 0.0
    %102 = vmatprep.subr.mxu0 0.0
    %103 = vmatpush1.msra.mxu0 0.0
    %104 = vmatprep.subr.mxu0 0.0
    %105 = vmatpush1.msra.mxu0 0.0
    %106 = vmatprep.subr.mxu0 0.0
    %107 = vmatpush1.msra.mxu0 0.0
    %108 = vmatprep.subr.mxu0 0.0
    %109 = vmatpush1.msra.mxu0 0.0
    %110 = vmatprep.subr.mxu0 0.0
    %111 = vmatpush1.msra.mxu0 0.0
    %112 = vmatprep.subr.mxu0 0.0
    %113 = vmatpush1.msra.mxu0 0.0
    %114 = vmatprep.subr.mxu0 0.0
    %115 = vmatpush1.msra.mxu0 0.0
    %116 = vmatprep.subr.mxu0 0.0
    %117 = vmatpush1.msra.mxu0 0.0
    %118 = vmatprep.subr.mxu0 0.0
    %119 = vmatpush1.msra.mxu0 0.0
    %120 = vmatprep.subr.mxu0 0.0
    %121 = vmatpush1.msra.mxu0 0.0
    %122 = vmatprep.subr.mxu0 0.0
    %123 = vmatpush1.msra.mxu0 0.0
    %124 = vmatprep.subr.mxu0 0.0
    %125 = vmatpush1.msra.mxu0 0.0
    %126 = vmatprep.subr.mxu0 0.0
    %127 = vmatpush1.msra.mxu0 0.0
    %128 = vmatprep.subr.mxu0 0.0
    %129 = vmatpush1.msra.mxu0 0.0
    %130 = vmatprep.mubr.f32.mxu0 0.0
    %131 = vmatmul.mubr.f32.gmra.mrb[0].mxu0 %v61
    %v132 = vpop.f32.mrb[0].mxu0
    %v133 = vadd.f32 %v57, %v132
    %v134 = vpop.f32.mrb[0].mxu0
    %135 = vmatprep.mubr.f32.mxu0 0.0
    %136 = vmatmul.mubr.f32.gmra.mrb[0].mxu0 %v64
    %v137 = vpop.f32.mrb[0].mxu0
    %v138 = vadd.f32 %v57, %v137
    %v139 = vpop.f32.mrb[0].mxu0
    %140 = vdwg.mxu0
    %v141 = vtanh.pop %v133
    %v142 = vtanh.pop %v138
    %v143 = vld [vmem:[#allocation5] sm:$0xff]
    %v144 = vld [vmem:[#allocation5 + $0x8] sm:$0xff]
    %v145 = vadd.f32 %v141, %v143
    %v146 = vadd.f32 %v142, %v144
    %vm147 = vcmask 523264
    %148 = vst.msk [vmem:[#allocation7] sm:$0xff] %vm147, %v145
    %149 = vst.msk [vmem:[#allocation7 + $0x8] sm:$0xff] %vm147, %v146
    // Predicated region
    $region26: #{tpu_custom_call.1} parent=1 // pred_check
      _
    $region27: #{tpu_custom_call.1} parent=1 // pred_check_branch
      %151 = sbr.rel (0) target = $region29
    $region28: #{tpu_custom_call.1} parent=1 // pred_region
      %s153 = ssub.s32 256, 256
      %154 = vsyncadd [#allocation4], %s153
      %s155 = sshll.u32 [#allocation7], 4
      %s156 = int_to_ptr.vmem [resolvable:$true] %s155
      %161 = dma.vmem_to_hbm [thread:$0]  %s156, 256, %s4, [#allocation4], 128, 128, 8
    $region29: #{tpu_custom_call.1} parent=1 // pred_fallthru
      _
    // Predicated region
    $region30: #{tpu_custom_call.1} parent=1 // pred_check
      _
    $region31: #{tpu_custom_call.1} parent=1 // pred_check_branch
      %163 = sbr.rel (0) target = $region33
    $region32: #{tpu_custom_call.1} parent=1 // pred_region
      %164 = dma.done [#allocation4], 256
    $region33: #{tpu_custom_call.1} parent=1 // pred_fallthru
      _
    %165 = vsyncpa [#allocation3], 1
    %166 = vsyncpa [#allocation6], 1
    %167 = vsyncpa [#allocation4], 1

</llo_original>
